<compile_context>
chip_gen: v5e
topology: v5e:2x2
jax: 0.10.0
libtpu: 0.0.40
codegen_flags: <defaults>
</compile_context>

<pallas_src>
import jax
import jax.numpy as jnp
from jax.experimental import pallas as pl
from jax.experimental.pallas import tpu as pltpu


def _round_up(x, m):
    return (x + m - 1) // m * m


# ----------------------------------------------------------------------------
# Pallas kernel: shared MLP (1x1 conv == channel matmul) + ReLU, then max-pool
# over the nsample axis, channel-first throughout.  Grid = (batch, point tiles).
# ----------------------------------------------------------------------------
def _sa_mlp_maxpool_kernel(g_ref, w1t_ref, b1_ref, w2t_ref, b2_ref, o_ref):
    # g_ref block: (S, Cp, TM) bf16  (channels on sublanes, points on lanes)
    # o_ref block: (H2, TM) f32      (already PyTorch (B, Cout, npoint) layout)
    g = g_ref[...]

    # layer 1: S batched (H1, Cp) x (Cp, TM) MXU matmuls with f32 accumulation;
    # folded-BN bias + ReLU stay in f32 on the VPU.
    h = jnp.einsum('shc,sct->sht', w1t_ref[...], g,
                   preferred_element_type=jnp.float32)              # (S, H1, TM)
    h = jnp.maximum(h + b1_ref[...], 0.0)

    # layer 2
    h = jnp.einsum('soh,sht->sot', w2t_ref[...], h.astype(jnp.bfloat16),
                   preferred_element_type=jnp.float32)              # (S, H2, TM)
    h = jnp.maximum(h + b2_ref[...], 0.0)

    # max-pool over nsample: elementwise max across S lane-dense (H2, TM) slices.
    o_ref[...] = jnp.max(h, axis=0)


def _pick_point_tile(npoint, nsample, cp, h1, h2, target_tile=512):
    """Pick the point-tile (lane) size, padded point count and VMEM limit."""
    def est_bytes(tm):
        g_in = 2 * nsample * cp * tm * 2           # double-buffered bf16 input tile
        mids = nsample * (h1 + h2) * tm * 4        # f32 layer-1/2 activations
        outb = 2 * h2 * tm * 4                     # double-buffered f32 output tile
        wts = 2 * (nsample * (h1 * cp + h2 * h1) * 2 + (h1 + h2) * 4)
        return g_in + mids + outb + wts

    # >=128 keeps the (H2, TM) store lane-dense even at tiny npoint; grow toward
    # target_tile to amortize per-grid-step overhead and raise MXU occupancy.
    tm = max(128, min(_round_up(target_tile, 128), _round_up(npoint, 128)))
    budget = 24 * (1 << 20)                        # headroom for v5e (16 MiB) / v7x (64 MiB)
    while tm > 128 and est_bytes(tm) > budget:
        tm -= 128
    pp = _round_up(max(npoint, tm), tm)
    vmem_limit = int(min(max(2 * est_bytes(tm), 32 << 20), 56 << 20))
    return tm, pp, vmem_limit


def sa_mlp_maxpool(grouped, w1, b1, w2, b2, *, tm, vmem_limit):
    """grouped: (B, S, Cp, Pp) bf16 -> (B, H2, Pp) f32 (PyTorch channel-first)."""
    B, S, Cp, Pp = grouped.shape
    Cin, H1 = w1.shape
    H2 = w2.shape[1]
    assert Pp % tm == 0

    # Channel-padded, pre-transposed weights broadcast over the nsample batch dim
    # so both layers are plain batched matmuls (tiny; VMEM-resident via constant
    # index maps).
    w1p = jnp.pad(w1, ((0, Cp - Cin), (0, 0)))
    w1t = jnp.tile(jnp.transpose(w1p).astype(jnp.bfloat16)[None], (S, 1, 1))  # (S, H1, Cp)
    w2t = jnp.tile(jnp.transpose(w2).astype(jnp.bfloat16)[None], (S, 1, 1))   # (S, H2, H1)
    b1c = b1.reshape(H1, 1).astype(jnp.float32)
    b2c = b2.reshape(H2, 1).astype(jnp.float32)

    return pl.pallas_call(
        _sa_mlp_maxpool_kernel,
        out_shape=jax.ShapeDtypeStruct((B, H2, Pp), jnp.float32),
        grid_spec=pl.GridSpec(
            grid=(B, Pp // tm),
            in_specs=[
                pl.BlockSpec((None, S, Cp, tm), lambda b, r: (b, 0, 0, r)),
                pl.BlockSpec((S, H1, Cp), lambda b, r: (0, 0, 0)),   # VMEM-resident weights
                pl.BlockSpec((H1, 1), lambda b, r: (0, 0)),
                pl.BlockSpec((S, H2, H1), lambda b, r: (0, 0, 0)),
                pl.BlockSpec((H2, 1), lambda b, r: (0, 0)),
            ],
            out_specs=pl.BlockSpec((None, H2, tm), lambda b, r: (b, 0, r)),
        ),
        compiler_params=pltpu.CompilerParams(
            dimension_semantics=("parallel", "parallel"),
            vmem_limit_bytes=vmem_limit),
    )(grouped, w1t, b1c, w2t, b2c)


# ----------------------------------------------------------------------------
# Glue (plain JAX): furthest point sampling, ball-query, channel-first grouping.
# Sequential / data-dependent gathers, not the matmul hot path.
# ----------------------------------------------------------------------------
def furthest_point_sample(xyz, npoint):
    """xyz: (B, N, 3) -> (B, npoint) int32 indices.  Matches CUDA FPS (start=0)."""
    B, N, _ = xyz.shape

    def body(i, state):
        idxs, dists, farthest = state
        idxs = idxs.at[:, i].set(farthest)
        centroid = jnp.take_along_axis(xyz, farthest[:, None, None], axis=1)  # (B,1,3)
        d = jnp.sum((xyz - centroid) ** 2, axis=-1)                           # (B,N)
        dists = jnp.minimum(dists, d)
        farthest = jnp.argmax(dists, axis=-1).astype(jnp.int32)
        return idxs, dists, farthest

    idxs0 = jnp.zeros((B, npoint), jnp.int32)
    dists0 = jnp.full((B, N), 1e10, jnp.float32)
    far0 = jnp.zeros((B,), jnp.int32)
    idxs, _, _ = jax.lax.fori_loop(0, npoint, body, (idxs0, dists0, far0))
    return idxs


def ball_query(xyz, new_xyz, radius, nsample):
    """Ball-query indices (B, P, nsample), CUDA semantics: first nsample
    in-radius points, padded with the first hit; an empty ball falls back to
    global index 0 (matches the zero-initialised idx buffer in pointnet2_ops)."""
    B, N, _ = xyz.shape
    d2 = jnp.sum((new_xyz[:, :, None, :] - xyz[:, None, :, :]) ** 2, axis=-1)  # (B,P,N)
    mask = d2 < (radius ** 2)
    order = jnp.broadcast_to(jnp.arange(N, dtype=jnp.int32), mask.shape)
    cand = jnp.where(mask, order, N)               # N == sentinel for "not in ball"
    idx = jnp.sort(cand, axis=-1)[..., :nsample]
    first = idx[..., :1]
    idx = jnp.where(idx == N, first, idx)
    return jnp.where(idx == N, 0, idx).astype(jnp.int32)


def group_channel_first(xyz, new_xyz, features, idx, cp, pp):
    """QueryAndGroup(use_xyz=True) emitted directly in the kernel-native
    (B, nsample, Cp, Pp) bf16 channel-first layout, fusing the pad + cast into
    the gather (no extra HBM pass over the nsample-times-larger grouped tensor;
    only the raw (B, N, C) point data is transposed)."""
    B, N, _ = xyz.shape
    P = new_xyz.shape[1]
    S = idx.shape[-1]
    idx_t = jnp.transpose(idx, (0, 2, 1))                         # (B, S, P)

    xyz_cf = jnp.transpose(xyz, (0, 2, 1))                        # (B, 3, N)
    gx = jnp.take_along_axis(
        xyz_cf[:, None, :, :],
        jnp.broadcast_to(idx_t[:, :, None, :], (B, S, 3, P)), axis=3)   # (B,S,3,P)
    gx = gx - jnp.transpose(new_xyz, (0, 2, 1))[:, None, :, :]    # center on new_xyz
    parts = [gx.astype(jnp.bfloat16)]
    cin = 3
    if features is not None:
        C = features.shape[-1]
        feat_cf = jnp.transpose(features, (0, 2, 1))              # (B, C, N)
        gf = jnp.take_along_axis(
            feat_cf[:, None, :, :],
            jnp.broadcast_to(idx_t[:, :, None, :], (B, S, C, P)), axis=3)
        parts.append(gf.astype(jnp.bfloat16))
        cin += C
    if cp > cin:
        parts.append(jnp.zeros((B, S, cp - cin, P), jnp.bfloat16))
    g = jnp.concatenate(parts, axis=2)                            # (B, S, Cp, P)
    if pp > P:
        g = jnp.pad(g, ((0, 0), (0, 0), (0, 0), (0, pp - P)))
    return g


def group_reference(xyz, new_xyz, features, idx):
    """f32 row-major grouped tensor (B, P, S, 3+C) — only for tolerance checks."""
    grouped_xyz = jnp.take_along_axis(xyz[:, None, :, :], idx[..., None], axis=2)
    grouped_xyz = grouped_xyz - new_xyz[:, :, None, :]
    if features is None:
        return grouped_xyz
    grouped_feat = jnp.take_along_axis(features[:, None, :, :], idx[..., None], axis=2)
    return jnp.concatenate([grouped_xyz, grouped_feat], axis=-1)


def fold_bn_into_conv(w, b, gamma, beta, mean, var, eps=1e-5):
    """Eval-mode BatchNorm fold into a 1x1 conv (w: (Cin, Cout), b: (Cout,))."""
    scale = gamma / jnp.sqrt(var + eps)
    return w * scale[None, :], (b - mean) * scale + beta


def sa_module_forward(xyz, features, params, *, npoint, nsample, radius,
                      target_tile=512):
    """Equivalent of _PointnetSAModuleBase.forward with one grouper/MLP."""
    w1, b1, w2, b2 = params
    Cin, H1 = w1.shape
    H2 = w2.shape[1]
    cp = _round_up(Cin, 8)
    tm, pp, vmem_limit = _pick_point_tile(npoint, nsample, cp, H1, H2, target_tile)

    fps_idx = furthest_point_sample(xyz, npoint)
    new_xyz = jnp.take_along_axis(xyz, fps_idx[..., None], axis=1)   # (B, npoint, 3)
    idx = ball_query(xyz, new_xyz, radius, nsample)                  # (B, npoint, S)
    # TODO(synk): scalar-prefetch `idx` into SMEM and gather from VMEM-resident
    #             (Cp, N) point/feature slabs inside the kernel so the grouped
    #             (B, S, Cp, Pp) tensor is never materialised in HBM.
    grouped = group_channel_first(xyz, new_xyz, features, idx, cp, pp)  # (B,S,Cp,Pp) bf16
    feats = sa_mlp_maxpool(grouped, w1, b1, w2, b2, tm=tm, vmem_limit=vmem_limit)
    # Padded point columns hold relu(bias) garbage -> slice them off here;
    # keep this invariant consistent with pp/tm above.
    return new_xyz, feats[:, :, :npoint]                               # (B, H2, npoint)


if __name__ == "__main__":
    key = jax.random.PRNGKey(0)
    B, N, C = 2, 16, 4
    npoint, nsample, radius = 8, 8, 0.4
    Cin = 3 + C           # use_xyz=True
    H1, H2 = 16, 32       # mlp = [Cin, 16, 32]

    k1, k2, k3, k4 = jax.random.split(key, 4)
    xyz = jax.random.uniform(k1, (B, N, 3), dtype=jnp.float32)
    features = jax.random.normal(k2, (B, N, C), dtype=jnp.float32)

    # Conv2d 1x1 weights as (Cin, Cout) matrices; zero biases.
    w1 = jax.random.normal(k3, (Cin, H1), jnp.float32) * 0.1
    w2 = jax.random.normal(k4, (H1, H2), jnp.float32) * 0.1
    b1 = jnp.zeros((H1,), jnp.float32)
    b2 = jnp.zeros((H2,), jnp.float32)

    # Fold eval-mode BatchNorm2d (default init: gamma=1, beta=0, mean=0, var=1).
    w1f, b1f = fold_bn_into_conv(w1, b1, jnp.ones(H1), jnp.zeros(H1),
                                 jnp.zeros(H1), jnp.ones(H1))
    w2f, b2f = fold_bn_into_conv(w2, b2, jnp.ones(H2), jnp.zeros(H2),
                                 jnp.zeros(H2), jnp.ones(H2))
    params = (w1f, b1f, w2f, b2f)

    new_xyz, new_features = sa_module_forward(
        xyz, features, params, npoint=npoint, nsample=nsample, radius=radius)
    jax.block_until_ready((new_xyz, new_features))

    assert new_xyz.shape == (B, npoint, 3)
    assert new_features.shape == (B, H2, npoint)
    assert bool(jnp.all(jnp.isfinite(new_features)))

    # Explicit tolerance validation of the bf16 grouped tensor against an f32
    # reference (addresses the bf16-precision concern for centered xyz/features).
    fps_idx = furthest_point_sample(xyz, npoint)
    new_xyz_ref = jnp.take_along_axis(xyz, fps_idx[..., None], axis=1)
    idx = ball_query(xyz, new_xyz_ref, radius, nsample)
    gref = group_reference(xyz, new_xyz_ref, features, idx)          # (B,P,S,Cin) f32
    h = jnp.maximum(jnp.einsum('bpsc,ch->bpsh', gref, w1f) + b1f, 0.0)
    h = jnp.maximum(jnp.einsum('bpsh,ho->bpso', h, w2f) + b2f, 0.0)
    ref = jnp.transpose(jnp.max(h, axis=2), (0, 2, 1))               # (B, H2, npoint)
    err = float(jnp.max(jnp.abs(new_features - ref)))
    assert err < 5e-2, f"max abs err vs f32 reference: {err}"
    print("KERNEL_OK")
</pallas_src>

<mosaic_0001>
module attributes {stable_mosaic.version = 11 : i64} {
  func.func @_sa_mlp_maxpool_kernel(%arg0: i32, %arg1: i32, %arg2: memref<1x8x8x128xbf16, #tpu.memory_space<vmem>>, %arg3: memref<8x16x8xbf16, #tpu.memory_space<vmem>>, %arg4: memref<16x1xf32, #tpu.memory_space<vmem>>, %arg5: memref<8x32x16xbf16, #tpu.memory_space<vmem>>, %arg6: memref<32x1xf32, #tpu.memory_space<vmem>>, %arg7: memref<1x32x128xf32, #tpu.memory_space<vmem>>) attributes {dimension_semantics = [#tpu.dimension_semantics<parallel>, #tpu.dimension_semantics<parallel>], iteration_bounds = array<i64: 2, 1>, scalar_prefetch = 0 : i64, scratch_operands = 0 : i64, tpu.core_type = #tpu.core_type<tc>, window_params = [{transform_indices = @transform_0, window_bounds = array<i64: 1, 8, 8, 128>}, {pipeline_mode = #tpu.pipeline_mode<synchronous>, transform_indices = @transform_1, window_bounds = array<i64: 8, 16, 8>}, {pipeline_mode = #tpu.pipeline_mode<synchronous>, transform_indices = @transform_2, window_bounds = array<i64: 16, 1>}, {pipeline_mode = #tpu.pipeline_mode<synchronous>, transform_indices = @transform_3, window_bounds = array<i64: 8, 32, 16>}, {pipeline_mode = #tpu.pipeline_mode<synchronous>, transform_indices = @transform_4, window_bounds = array<i64: 32, 1>}, {transform_indices = @transform_5, window_bounds = array<i64: 1, 32, 128>}]} {
    %c0 = arith.constant 0 : index
    %c0_0 = arith.constant 0 : index
    %c0_1 = arith.constant 0 : index
    %c0_2 = arith.constant 0 : index
    %0 = vector.load %arg2[%c0, %c0_0, %c0_1, %c0_2] : memref<1x8x8x128xbf16, #tpu.memory_space<vmem>>, vector<1x8x8x128xbf16>
    %1 = vector.shape_cast %0 : vector<1x8x8x128xbf16> to vector<8x8x128xbf16>
    %c0_3 = arith.constant 0 : index
    %c0_4 = arith.constant 0 : index
    %c0_5 = arith.constant 0 : index
    %2 = vector.load %arg3[%c0_3, %c0_4, %c0_5] : memref<8x16x8xbf16, #tpu.memory_space<vmem>>, vector<8x16x8xbf16>
    "tpu.trace_start"() <{level = 10 : i32, message = "shc,sct->sht"}> : () -> ()
    %cst = arith.constant dense<0.000000e+00> : vector<8x16x128xf32>
    %3 = tpu.matmul %2, %1, %cst {dimension_numbers = #tpu.dot_dimension_numbers<[2], [1], [1], [2], [0, 0, 0, 1, 1, 2], [0], [0]>} : vector<8x16x8xbf16>, vector<8x8x128xbf16>, vector<8x16x128xf32> -> vector<8x16x128xf32>
    "tpu.trace_stop"() : () -> ()
    %c0_6 = arith.constant 0 : index
    %c0_7 = arith.constant 0 : index
    %4 = vector.load %arg4[%c0_6, %c0_7] : memref<16x1xf32, #tpu.memory_space<vmem>>, vector<16x1xf32>
    %5 = vector.shape_cast %4 : vector<16x1xf32> to vector<1x16x1xf32>
    %6 = vector.broadcast %5 : vector<1x16x1xf32> to vector<8x16x128xf32>
    %7 = arith.addf %3, %6 : vector<8x16x128xf32>
    %cst_8 = arith.constant 0.000000e+00 : f32
    %8 = vector.broadcast %cst_8 : f32 to vector<8x16x128xf32>
    %9 = arith.maximumf %7, %8 : vector<8x16x128xf32>
    %c0_9 = arith.constant 0 : index
    %c0_10 = arith.constant 0 : index
    %c0_11 = arith.constant 0 : index
    %10 = vector.load %arg5[%c0_9, %c0_10, %c0_11] : memref<8x32x16xbf16, #tpu.memory_space<vmem>>, vector<8x32x16xbf16>
    %11 = arith.truncf %9 : vector<8x16x128xf32> to vector<8x16x128xbf16>
    "tpu.trace_start"() <{level = 10 : i32, message = "soh,sht->sot"}> : () -> ()
    %cst_12 = arith.constant dense<0.000000e+00> : vector<8x32x128xf32>
    %12 = tpu.matmul %10, %11, %cst_12 {dimension_numbers = #tpu.dot_dimension_numbers<[2], [1], [1], [2], [0, 0, 0, 1, 1, 2], [0], [0]>} : vector<8x32x16xbf16>, vector<8x16x128xbf16>, vector<8x32x128xf32> -> vector<8x32x128xf32>
    "tpu.trace_stop"() : () -> ()
    %c0_13 = arith.constant 0 : index
    %c0_14 = arith.constant 0 : index
    %13 = vector.load %arg6[%c0_13, %c0_14] : memref<32x1xf32, #tpu.memory_space<vmem>>, vector<32x1xf32>
    %14 = vector.shape_cast %13 : vector<32x1xf32> to vector<1x32x1xf32>
    %15 = vector.broadcast %14 : vector<1x32x1xf32> to vector<8x32x128xf32>
    %16 = arith.addf %12, %15 : vector<8x32x128xf32>
    %cst_15 = arith.constant 0.000000e+00 : f32
    %17 = vector.broadcast %cst_15 : f32 to vector<8x32x128xf32>
    %18 = arith.maximumf %16, %17 : vector<8x32x128xf32>
    %cst_16 = arith.constant dense<0xFF800000> : vector<32x128xf32>
    %19 = vector.multi_reduction <maximumf>, %18, %cst_16 [0] : vector<8x32x128xf32> to vector<32x128xf32>
    %c0_17 = arith.constant 0 : index
    %c0_18 = arith.constant 0 : index
    %c0_19 = arith.constant 0 : index
    %20 = vector.load %arg7[%c0_17, %c0_18, %c0_19] : memref<1x32x128xf32, #tpu.memory_space<vmem>>, vector<1x32x128xf32>
    %21 = vector.shape_cast %20 : vector<1x32x128xf32> to vector<32x128xf32>
    %22 = vector.shape_cast %19 : vector<32x128xf32> to vector<1x32x128xf32>
    tpu.vector_store %arg7[%c0_17, %c0_18, %c0_19], %22 {strides = array<i32>} : memref<1x32x128xf32, #tpu.memory_space<vmem>>, vector<1x32x128xf32>,
    return
  }
  func.func @transform_0(%arg0: i32, %arg1: i32) -> (i32, i32, i32, i32) {
    %c0_i32 = arith.constant 0 : i32
    %c0_i32_0 = arith.constant 0 : i32
    %c0_i32_1 = arith.constant 0 : i32
    return %arg0, %c0_i32, %c0_i32_0, %arg1 : i32, i32, i32, i32
  }
  func.func @transform_1(%arg0: i32, %arg1: i32) -> (i32, i32, i32) {
    %c0_i32 = arith.constant 0 : i32
    %c0_i32_0 = arith.constant 0 : i32
    %c0_i32_1 = arith.constant 0 : i32
    %c0_i32_2 = arith.constant 0 : i32
    return %c0_i32, %c0_i32_0, %c0_i32_1 : i32, i32, i32
  }
  func.func @transform_2(%arg0: i32, %arg1: i32) -> (i32, i32) {
    %c0_i32 = arith.constant 0 : i32
    %c0_i32_0 = arith.constant 0 : i32
    %c0_i32_1 = arith.constant 0 : i32
    return %c0_i32, %c0_i32_0 : i32, i32
  }
  func.func @transform_3(%arg0: i32, %arg1: i32) -> (i32, i32, i32) {
    %c0_i32 = arith.constant 0 : i32
    %c0_i32_0 = arith.constant 0 : i32
    %c0_i32_1 = arith.constant 0 : i32
    %c0_i32_2 = arith.constant 0 : i32
    return %c0_i32, %c0_i32_0, %c0_i32_1 : i32, i32, i32
  }
  func.func @transform_4(%arg0: i32, %arg1: i32) -> (i32, i32) {
    %c0_i32 = arith.constant 0 : i32
    %c0_i32_0 = arith.constant 0 : i32
    %c0_i32_1 = arith.constant 0 : i32
    return %c0_i32, %c0_i32_0 : i32, i32
  }
  func.func @transform_5(%arg0: i32, %arg1: i32) -> (i32, i32, i32) {
    %c0_i32 = arith.constant 0 : i32
    %c0_i32_0 = arith.constant 0 : i32
    return %arg0, %c0_i32, %arg1 : i32, i32, i32
  }
}

</mosaic_0001>

<llo_original>
// kernel: tpu_custom_call.1
$region0: #{tpu_custom_call.1}
  #allocation0 [shape = 'u32[]', space=smem, size = 0x4, offset = 0x4, fixed_abs, tag = 'smem constant byte address 0x4 - core index']
  #allocation1 [shape = 'u32[72,128]{1,0:T(1,128)}', space=vmem, size = 0x9000, scoped, tag = 'internal scratch']
  %s0 = inlined_call_operand.vmem [shape: bf16[2,8,8,128], index: 0, kind: input, shape index: {}]
  %s1 = inlined_call_operand.vmem [shape: bf16[8,16,8], index: 1, kind: input, shape index: {}]
  %s2 = inlined_call_operand.vmem [shape: f32[16,1], index: 2, kind: input, shape index: {}]
  %s3 = inlined_call_operand.vmem [shape: bf16[8,32,16], index: 3, kind: input, shape index: {}]
  %s4 = inlined_call_operand.vmem [shape: f32[32,1], index: 4, kind: input, shape index: {}]
  %s5 = inlined_call_operand.hbm [shape: f32[2,32,128], index: 5, kind: output, shape index: {}]
  %s6 = sld [smem:[#allocation0]]
  $region53: #{tpu_custom_call.1} parent=0
    _
  %s8 = ssub.s32 1, %s6
  %s9 = scalar_select 0, %s8, %s6
  $region1: #{tpu_custom_call.1} parent=0
    #allocation2 [shape = 'u8[32768]{0}', space=vmem, size = 0x8000, scoped, tag = 'output window, operand 0']
    #allocation3 [shape = 's32[2]{0}', space=sflag, size = 0x8, scoped, tag = 'scoped memory for tpu_custom_call.1']
    %10 = vsyncpa [#allocation3], 0
    %s11 = scalar_lea.sflag [#allocation3], 1
    %12 = vsyncpa %s11, 0
    loop: start=0, step=1, limit=4
    $region2: #{tpu_custom_call.1} parent=1 // loop_pre_header
      _
    $region3: #{tpu_custom_call.1} parent=1 // loop_header
      %s14 = sphi 0, %s18
      %p15 = scmp.ge.s32.totalorder %s14, 4
      %s21 = sphi 0, %s33
      %s22 = sphi 0, %s29
      %s23 = sphi 0, %s21
      %s24 = sphi 0, %s22
      %s25 = sphi 0, %s23
      %s26 = sphi 0, %s24
      %s38 = sphi 0, %s40
      %s41 = sphi 0, %s38
      %s42 = sphi 0, %s41
      %s58 = sphi 0, %s42
      %s62 = sphi 0, %s62
      %s64 = sphi 0, %s62
      %s65 = sphi 0, %s64
      %s79 = sphi 0, %s65
      %s83 = sphi 0, %s83
      %s85 = sphi 0, %s83
      %s86 = sphi 0, %s85
      %s100 = sphi 0, %s86
      %s104 = sphi 0, %s104
      %s106 = sphi 0, %s104
      %s107 = sphi 0, %s106
      %s121 = sphi 0, %s107
      %s125 = sphi 0, %s125
      %s127 = sphi 0, %s125
      %s128 = sphi 0, %s127
      %s142 = sphi 0, %s128
      %s150 = sphi 0, %s152
      %s153 = sphi 0, %s150
      %s154 = sphi 0, %s153
      %s170 = sphi 0, %s154
    $region4: #{tpu_custom_call.1} parent=1 // loop_header_branch
      %17 = sbr.rel (%p15) target = $region8
    $region5: #{tpu_custom_call.1} parent=1 // loop_body
      %s19 = ssub.s32 %s14, 1
      %s20 = ssub.s32 %s14, 2
      %s27 = sadd.s32 1, %s22
      %p28 = scmp.ge.s32.totalorder %s27, 1
      %s29 = scalar_select %p28, 0, %s27
      %s30 = sadd.s32 1, %s21
      %s31 = scalar_select %p28, %s30, %s21
      %p32 = scmp.ge.s32.totalorder %s31, 2
      %s33 = scalar_select %p32, 0, %s31
      %s34 = ssub.s32 %s21, %s33
      %s35 = ssub.s32 %s22, %s29
      %s36 = sor.u32 %s34, %s35
      %p37 = scmp.eq.s32.totalorder %s36, 0
      %s39 = sadd.s32 %s38, 1
      %s40 = scalar_select %p37, %s38, %s39
      %p43 = pneg %p37
      %p44 = scmp.eq.s32.totalorder %s14, 1
      %p45 = por %p43, %p44
      %p46 = scmp.ne.s32.totalorder %s38, %s41
      %p47 = scmp.eq.s32.totalorder %s14, 0
      %p48 = por %p46, %p47
      %p49 = scmp.ne.s32.totalorder %s38, %s41
      %p50 = scmp.eq.s32.totalorder %s19, 1
      %p51 = por %p49, %p50
      %p52 = scmp.ne.s32.totalorder %s41, %s42
      %p53 = scmp.eq.s32.totalorder %s19, 0
      %p54 = por %p52, %p53
      %p55 = scmp.ne.s32.totalorder %s41, %s42
      %p56 = scmp.eq.s32.totalorder %s20, 1
      %p57 = por %p55, %p56
      %p59 = scmp.ne.s32.totalorder %s42, %s58
      %p60 = scmp.eq.s32.totalorder %s20, 0
      %p61 = por %p59, %p60
      %s63 = sadd.s32 %s62, 1
      %p66 = scmp.eq.s32.totalorder %s14, 1
      %p67 = scmp.ne.s32.totalorder %s62, %s64
      %p68 = scmp.eq.s32.totalorder %s14, 0
      %p69 = por %p67, %p68
      %p70 = scmp.ne.s32.totalorder %s62, %s64
      %p71 = scmp.eq.s32.totalorder %s19, 1
      %p72 = por %p70, %p71
      %p73 = scmp.ne.s32.totalorder %s64, %s65
      %p74 = scmp.eq.s32.totalorder %s19, 0
      %p75 = por %p73, %p74
      %p76 = scmp.ne.s32.totalorder %s64, %s65
      %p77 = scmp.eq.s32.totalorder %s20, 1
      %p78 = por %p76, %p77
      %p80 = scmp.ne.s32.totalorder %s65, %s79
      %p81 = scmp.eq.s32.totalorder %s20, 0
      %p82 = por %p80, %p81
      %s84 = sadd.s32 %s83, 1
      %p87 = scmp.eq.s32.totalorder %s14, 1
      %p88 = scmp.ne.s32.totalorder %s83, %s85
      %p89 = scmp.eq.s32.totalorder %s14, 0
      %p90 = por %p88, %p89
      %p91 = scmp.ne.s32.totalorder %s83, %s85
      %p92 = scmp.eq.s32.totalorder %s19, 1
      %p93 = por %p91, %p92
      %p94 = scmp.ne.s32.totalorder %s85, %s86
      %p95 = scmp.eq.s32.totalorder %s19, 0
      %p96 = por %p94, %p95
      %p97 = scmp.ne.s32.totalorder %s85, %s86
      %p98 = scmp.eq.s32.totalorder %s20, 1
      %p99 = por %p97, %p98
      %p101 = scmp.ne.s32.totalorder %s86, %s100
      %p102 = scmp.eq.s32.totalorder %s20, 0
      %p103 = por %p101, %p102
      %s105 = sadd.s32 %s104, 1
      %p108 = scmp.eq.s32.totalorder %s14, 1
      %p109 = scmp.ne.s32.totalorder %s104, %s106
      %p110 = scmp.eq.s32.totalorder %s14, 0
      %p111 = por %p109, %p110
      %p112 = scmp.ne.s32.totalorder %s104, %s106
      %p113 = scmp.eq.s32.totalorder %s19, 1
      %p114 = por %p112, %p113
      %p115 = scmp.ne.s32.totalorder %s106, %s107
      %p116 = scmp.eq.s32.totalorder %s19, 0
      %p117 = por %p115, %p116
      %p118 = scmp.ne.s32.totalorder %s106, %s107
      %p119 = scmp.eq.s32.totalorder %s20, 1
      %p120 = por %p118, %p119
      %p122 = scmp.ne.s32.totalorder %s107, %s121
      %p123 = scmp.eq.s32.totalorder %s20, 0
      %p124 = por %p122, %p123
      %s126 = sadd.s32 %s125, 1
      %p129 = scmp.eq.s32.totalorder %s14, 1
      %p130 = scmp.ne.s32.totalorder %s125, %s127
      %p131 = scmp.eq.s32.totalorder %s14, 0
      %p132 = por %p130, %p131
      %p133 = scmp.ne.s32.totalorder %s125, %s127
      %p134 = scmp.eq.s32.totalorder %s19, 1
      %p135 = por %p133, %p134
      %p136 = scmp.ne.s32.totalorder %s127, %s128
      %p137 = scmp.eq.s32.totalorder %s19, 0
      %p138 = por %p136, %p137
      %p139 = scmp.ne.s32.totalorder %s127, %s128
      %p140 = scmp.eq.s32.totalorder %s20, 1
      %p141 = por %p139, %p140
      %p143 = scmp.ne.s32.totalorder %s128, %s142
      %p144 = scmp.eq.s32.totalorder %s20, 0
      %p145 = por %p143, %p144
      %s146 = ssub.s32 %s21, %s33
      %s147 = ssub.s32 %s22, %s29
      %s148 = sor.u32 %s146, %s147
      %p149 = scmp.eq.s32.totalorder %s148, 0
      %s151 = sadd.s32 %s150, 1
      %s152 = scalar_select %p149, %s150, %s151
      %p155 = pneg %p149
      %p156 = scmp.eq.s32.totalorder %s14, 1
      %p157 = por %p155, %p156
      %p158 = scmp.ne.s32.totalorder %s150, %s153
      %p159 = scmp.eq.s32.totalorder %s14, 0
      %p160 = por %p158, %p159
      %p161 = scmp.ne.s32.totalorder %s150, %s153
      %p162 = scmp.eq.s32.totalorder %s19, 1
      %p163 = por %p161, %p162
      %p164 = scmp.ne.s32.totalorder %s153, %s154
      %p165 = scmp.eq.s32.totalorder %s19, 0
      %p166 = por %p164, %p165
      %p167 = scmp.ne.s32.totalorder %s153, %s154
      %p168 = scmp.eq.s32.totalorder %s20, 1
      %p169 = por %p167, %p168
      %p171 = scmp.ne.s32.totalorder %s154, %s170
      %p172 = scmp.eq.s32.totalorder %s20, 0
      %p173 = por %p171, %p172
      %p174 = scmp.le.s32.totalorder 1, %s14
      %p175 = scmp.lt.s32.totalorder %s14, 3
      %p176 = pnand %p174, %p175
      %p177 = pneg %p176
      // Predicated region
      $region9: #{tpu_custom_call.1} parent=5 // pred_check
        _
      $region10: #{tpu_custom_call.1} parent=5 // pred_check_branch
        %179 = sbr.rel (%p176) target = $region12
      $region11: #{tpu_custom_call.1} parent=5 // pred_region
        %s180 = ssub.s32 %s14, 1
        // Predicated region
        $region13: #{tpu_custom_call.1} parent=11 // pred_check
          %p181 = pneg %p75
        $region14: #{tpu_custom_call.1} parent=11 // pred_check_branch
          %183 = sbr.rel (%p181) target = $region16
        $region15: #{tpu_custom_call.1} parent=11 // pred_region
          _
        $region16: #{tpu_custom_call.1} parent=11 // pred_fallthru
          _
        // Predicated region
        $region17: #{tpu_custom_call.1} parent=11 // pred_check
          %p184 = pneg %p96
        $region18: #{tpu_custom_call.1} parent=11 // pred_check_branch
          %186 = sbr.rel (%p184) target = $region20
        $region19: #{tpu_custom_call.1} parent=11 // pred_region
          _
        $region20: #{tpu_custom_call.1} parent=11 // pred_fallthru
          _
        // Predicated region
        $region21: #{tpu_custom_call.1} parent=11 // pred_check
          %p187 = pneg %p117
        $region22: #{tpu_custom_call.1} parent=11 // pred_check_branch
          %189 = sbr.rel (%p187) target = $region24
        $region23: #{tpu_custom_call.1} parent=11 // pred_region
          _
        $region24: #{tpu_custom_call.1} parent=11 // pred_fallthru
          _
        // Predicated region
        $region25: #{tpu_custom_call.1} parent=11 // pred_check
          %p190 = pneg %p138
        $region26: #{tpu_custom_call.1} parent=11 // pred_check_branch
          %192 = sbr.rel (%p190) target = $region28
        $region27: #{tpu_custom_call.1} parent=11 // pred_region
          _
        $region28: #{tpu_custom_call.1} parent=11 // pred_fallthru
          _
      $region12: #{tpu_custom_call.1} parent=5 // pred_fallthru
        _
      %p193 = scmp.lt.s32.totalorder %s14, 2
      // Predicated region
      $region29: #{tpu_custom_call.1} parent=5 // pred_check
        %p194 = pneg %p193
      $region30: #{tpu_custom_call.1} parent=5 // pred_check_branch
        %196 = sbr.rel (%p194) target = $region32
      $region31: #{tpu_custom_call.1} parent=5 // pred_region
        // Predicated region
        $region33: #{tpu_custom_call.1} parent=31 // pred_check
          %p197 = pneg %p48
        $region34: #{tpu_custom_call.1} parent=31 // pred_check_branch
          %199 = sbr.rel (%p197) target = $region36
        $region35: #{tpu_custom_call.1} parent=31 // pred_region
          %p200 = scmp.lt.s32.totalorder %s21, 1
          %s201 = scalar_select %p200, %s21, 1
          %p202 = scmp.lt.s32.totalorder %s22, 0
          %s203 = scalar_select %p202, %s22, 0
          %s204 = smul.addr %s201, 8
          %s205 = sadd.s32 %s203, %s204
          %s206 = smul.addr %s205, 4
          %s207 = scalar_lea.vmem %s0, %s206
        $region36: #{tpu_custom_call.1} parent=31 // pred_fallthru
          _
      $region32: #{tpu_custom_call.1} parent=5 // pred_fallthru
        _
      %p208 = scmp.le.s32.totalorder 1, %s14
      %p209 = scmp.lt.s32.totalorder %s14, 3
      %p210 = pnand %p208, %p209
      %p211 = pneg %p210
      // Predicated region
      $region37: #{tpu_custom_call.1} parent=5 // pred_check
        _
      $region38: #{tpu_custom_call.1} parent=5 // pred_check_branch
        %213 = sbr.rel (%p210) target = $region40
      $region39: #{tpu_custom_call.1} parent=5 // pred_region
        %s214 = ssub.s32 %s14, 1
        %p215 = scmp.lt.s32.totalorder %s23, 1
        %s216 = scalar_select %p215, %s23, 1
        %p217 = scmp.lt.s32.totalorder %s24, 0
        %s218 = scalar_select %p217, %s24, 0
        %s219 = smul.addr %s216, 8
        %s220 = sadd.s32 %s218, %s219
        %s221 = smul.addr %s220, 4
        %s222 = scalar_lea.vmem %s0, %s221
        %p223 = pneg %p54
        %p224 = pneg %p51
        %p225 = pneg %p75
        %p226 = pneg %p72
        %p227 = pneg %p96
        %p228 = pneg %p93
        %p229 = pneg %p117
        %p230 = pneg %p114
        %p231 = pneg %p138
        %p232 = pneg %p135
        %p233 = pneg %p166
        %p234 = pneg %p163
        %s235 = sand.u32 %s153, 1
        %s236 = scalar_lea.sflag [#allocation3], %s235
        %s237 = sand.u32 %s153, 1
        %s238 = smul.addr %s237, 32
        %s239 = scalar_lea.vmem [#allocation2], %s238
        %p240 = scmp.lt.s32.totalorder %s23, 1
        %s241 = scalar_select %p240, %s23, 1
        %p242 = scmp.lt.s32.totalorder %s24, 0
        %s243 = scalar_select %p242, %s24, 0
        %s244 = smul.addr %s241, 8
        %s245 = sadd.s32 %s243, %s244
        %s246 = smul.addr %s245, 4
        %s247 = scalar_lea.vmem %s0, %s246
        %v249 = vld [vmem:[%s247] sm:$0xf]
        %v250 = vld [vmem:[%s247 + $0x4] sm:$0xf]
        %v251 = vld [vmem:[%s247 + $0x8] sm:$0xf]
        %v252 = vld [vmem:[%s247 + $0xc] sm:$0xf]
        %v253 = vld [vmem:[%s247 + $0x10] sm:$0xf]
        %v254 = vld [vmem:[%s247 + $0x14] sm:$0xf]
        %v255 = vld [vmem:[%s247 + $0x18] sm:$0xf]
        %v256 = vld [vmem:[%s247 + $0x1c] sm:$0xf]
        %v257 = vld [vmem:[%s1] sm:$0xf]
        %v258 = vld [vmem:[%s1 + $0x4] sm:$0xf]
        %v259 = vld [vmem:[%s1 + $0x8] sm:$0xf]
        %v260 = vld [vmem:[%s1 + $0xc] sm:$0xf]
        %v261 = vld [vmem:[%s1 + $0x10] sm:$0xf]
        %v262 = vld [vmem:[%s1 + $0x14] sm:$0xf]
        %v263 = vld [vmem:[%s1 + $0x18] sm:$0xf]
        %v264 = vld [vmem:[%s1 + $0x1c] sm:$0xf]
        %v265 = vld [vmem:[%s1 + $0x20] sm:$0xf]
        %v266 = vld [vmem:[%s1 + $0x24] sm:$0xf]
        %v267 = vld [vmem:[%s1 + $0x28] sm:$0xf]
        %v268 = vld [vmem:[%s1 + $0x2c] sm:$0xf]
        %v269 = vld [vmem:[%s1 + $0x30] sm:$0xf]
        %v270 = vld [vmem:[%s1 + $0x34] sm:$0xf]
        %v271 = vld [vmem:[%s1 + $0x38] sm:$0xf]
        %v272 = vld [vmem:[%s1 + $0x3c] sm:$0xf]
        %v273 = vld [vmem:[%s2] sm:$0xff]
        %v274 = vld [vmem:[%s2 + $0x8] sm:$0xff]
        %276 = vset.pattern.permute.xlu0 0
        %277 = vperm.xlu0 %276, %v273
        %v278 = vpop.permute.xlu0 %277
        %281 = vset.pattern.permute.xlu0 0
        %282 = vperm.xlu0 %281, %v274
        %v283 = vpop.permute.xlu0 %282
        %v287 = vunpack.c.l.b16 %v257
        %v288 = vunpack.c.l.b16 %v258
        %v289 = vpack.c.b16 %v288, %v287
        %vm290 = vcmask 64512
        %v292 = vsel %vm290, %v289, 0
        %vm294 = vcmask 1043456
        %v296 = vsel %vm294, %v249, 0
        %298 = vmatpush.bf16.msra.mxu0 0
        %299 = vmatpush.bf16.msra.mxu0 0
        %300 = vmatpush.bf16.msra.mxu0 0
        %301 = vmatpush.bf16.msra.mxu0 0
        %302 = vmatpush.bf16.msra.mxu0 0
        %303 = vmatpush.bf16.msra.mxu0 0
        %304 = vmatpush.bf16.msra.mxu0 0
        %305 = vmatpush.bf16.msra.mxu0 %v296
        %306 = vmatmul.bf16.gmra.mxu0 %v292
        %v307 = vpop.f32.mrf.mxu0
        %v308 = vadd.f32 %v278, %v307
        %v309 = vpop.f32.mrf.mxu0
        %v310 = vadd.f32 %v283, %v309
        %311 = vdwg.mxu0
        %v314 = vunpack.c.l.b16 %v259
        %v315 = vunpack.c.l.b16 %v260
        %v316 = vpack.c.b16 %v315, %v314
        %v318 = vsel %vm290, %v316, 0
        %v321 = vsel %vm294, %v250, 0
        %323 = vmatpush.bf16.msra.mxu0 0
        %324 = vmatpush.bf16.msra.mxu0 0
        %325 = vmatpush.bf16.msra.mxu0 0
        %326 = vmatpush.bf16.msra.mxu0 0
        %327 = vmatpush.bf16.msra.mxu0 0
        %328 = vmatpush.bf16.msra.mxu0 0
        %329 = vmatpush.bf16.msra.mxu0 0
        %330 = vmatpush.bf16.msra.mxu0 %v321
        %331 = vmatmul.bf16.gmra.mxu0 %v318
        %v332 = vpop.f32.mrf.mxu0
        %v333 = vadd.f32 %v278, %v332
        %v334 = vpop.f32.mrf.mxu0
        %v335 = vadd.f32 %v283, %v334
        %336 = vdwg.mxu0
        %v339 = vunpack.c.l.b16 %v261
        %v340 = vunpack.c.l.b16 %v262
        %v341 = vpack.c.b16 %v340, %v339
        %v343 = vsel %vm290, %v341, 0
        %v346 = vsel %vm294, %v251, 0
        %348 = vmatpush.bf16.msra.mxu0 0
        %349 = vmatpush.bf16.msra.mxu0 0
        %350 = vmatpush.bf16.msra.mxu0 0
        %351 = vmatpush.bf16.msra.mxu0 0
        %352 = vmatpush.bf16.msra.mxu0 0
        %353 = vmatpush.bf16.msra.mxu0 0
        %354 = vmatpush.bf16.msra.mxu0 0
        %355 = vmatpush.bf16.msra.mxu0 %v346
        %356 = vmatmul.bf16.gmra.mxu0 %v343
        %v357 = vpop.f32.mrf.mxu0
        %v358 = vadd.f32 %v278, %v357
        %v359 = vpop.f32.mrf.mxu0
        %v360 = vadd.f32 %v283, %v359
        %361 = vdwg.mxu0
        %v364 = vunpack.c.l.b16 %v263
        %v365 = vunpack.c.l.b16 %v264
        %v366 = vpack.c.b16 %v365, %v364
        %v368 = vsel %vm290, %v366, 0
        %v371 = vsel %vm294, %v252, 0
        %373 = vmatpush.bf16.msra.mxu0 0
        %374 = vmatpush.bf16.msra.mxu0 0
        %375 = vmatpush.bf16.msra.mxu0 0
        %376 = vmatpush.bf16.msra.mxu0 0
        %377 = vmatpush.bf16.msra.mxu0 0
        %378 = vmatpush.bf16.msra.mxu0 0
        %379 = vmatpush.bf16.msra.mxu0 0
        %380 = vmatpush.bf16.msra.mxu0 %v371
        %381 = vmatmul.bf16.gmra.mxu0 %v368
        %v382 = vpop.f32.mrf.mxu0
        %v383 = vadd.f32 %v278, %v382
        %v384 = vpop.f32.mrf.mxu0
        %v385 = vadd.f32 %v283, %v384
        %386 = vdwg.mxu0
        %v389 = vunpack.c.l.b16 %v265
        %v390 = vunpack.c.l.b16 %v266
        %v391 = vpack.c.b16 %v390, %v389
        %v393 = vsel %vm290, %v391, 0
        %v396 = vsel %vm294, %v253, 0
        %398 = vmatpush.bf16.msra.mxu0 0
        %399 = vmatpush.bf16.msra.mxu0 0
        %400 = vmatpush.bf16.msra.mxu0 0
        %401 = vmatpush.bf16.msra.mxu0 0
        %402 = vmatpush.bf16.msra.mxu0 0
        %403 = vmatpush.bf16.msra.mxu0 0
        %404 = vmatpush.bf16.msra.mxu0 0
        %405 = vmatpush.bf16.msra.mxu0 %v396
        %406 = vmatmul.bf16.gmra.mxu0 %v393
        %v407 = vpop.f32.mrf.mxu0
        %v408 = vadd.f32 %v278, %v407
        %v409 = vpop.f32.mrf.mxu0
        %v410 = vadd.f32 %v283, %v409
        %411 = vdwg.mxu0
        %v414 = vunpack.c.l.b16 %v267
        %v415 = vunpack.c.l.b16 %v268
        %v416 = vpack.c.b16 %v415, %v414
        %v418 = vsel %vm290, %v416, 0
        %v421 = vsel %vm294, %v254, 0
        %423 = vmatpush.bf16.msra.mxu0 0
        %424 = vmatpush.bf16.msra.mxu0 0
        %425 = vmatpush.bf16.msra.mxu0 0
        %426 = vmatpush.bf16.msra.mxu0 0
        %427 = vmatpush.bf16.msra.mxu0 0
        %428 = vmatpush.bf16.msra.mxu0 0
        %429 = vmatpush.bf16.msra.mxu0 0
        %430 = vmatpush.bf16.msra.mxu0 %v421
        %431 = vmatmul.bf16.gmra.mxu0 %v418
        %v432 = vpop.f32.mrf.mxu0
        %v433 = vadd.f32 %v278, %v432
        %v434 = vpop.f32.mrf.mxu0
        %v435 = vadd.f32 %v283, %v434
        %436 = vdwg.mxu0
        %v439 = vunpack.c.l.b16 %v269
        %v440 = vunpack.c.l.b16 %v270
        %v441 = vpack.c.b16 %v440, %v439
        %v443 = vsel %vm290, %v441, 0
        %v446 = vsel %vm294, %v255, 0
        %448 = vmatpush.bf16.msra.mxu0 0
        %449 = vmatpush.bf16.msra.mxu0 0
        %450 = vmatpush.bf16.msra.mxu0 0
        %451 = vmatpush.bf16.msra.mxu0 0
        %452 = vmatpush.bf16.msra.mxu0 0
        %453 = vmatpush.bf16.msra.mxu0 0
        %454 = vmatpush.bf16.msra.mxu0 0
        %455 = vmatpush.bf16.msra.mxu0 %v446
        %456 = vmatmul.bf16.gmra.mxu0 %v443
        %v457 = vpop.f32.mrf.mxu0
        %v458 = vadd.f32 %v278, %v457
        %v459 = vpop.f32.mrf.mxu0
        %v460 = vadd.f32 %v283, %v459
        %461 = vdwg.mxu0
        %v464 = vunpack.c.l.b16 %v271
        %v465 = vunpack.c.l.b16 %v272
        %v466 = vpack.c.b16 %v465, %v464
        %v468 = vsel %vm290, %v466, 0
        %v471 = vsel %vm294, %v256, 0
        %473 = vmatpush.bf16.msra.mxu0 0
        %474 = vmatpush.bf16.msra.mxu0 0
        %475 = vmatpush.bf16.msra.mxu0 0
        %476 = vmatpush.bf16.msra.mxu0 0
        %477 = vmatpush.bf16.msra.mxu0 0
        %478 = vmatpush.bf16.msra.mxu0 0
        %479 = vmatpush.bf16.msra.mxu0 0
        %480 = vmatpush.bf16.msra.mxu0 %v471
        %481 = vmatmul.bf16.gmra.mxu0 %v468
        %v482 = vpop.f32.mrf.mxu0
        %v483 = vadd.f32 %v278, %v482
        %v484 = vpop.f32.mrf.mxu0
        %v485 = vadd.f32 %v283, %v484
        %486 = vdwg.mxu0
        %v487 = vmax.f32 %v308, 0.0
        %v488 = vmax.f32 %v310, 0.0
        %v489 = vmax.f32 %v333, 0.0
        %v490 = vmax.f32 %v335, 0.0
        %v491 = vmax.f32 %v358, 0.0
        %v492 = vmax.f32 %v360, 0.0
        %v493 = vmax.f32 %v383, 0.0
        %v494 = vmax.f32 %v385, 0.0
        %v495 = vmax.f32 %v408, 0.0
        %v496 = vmax.f32 %v410, 0.0
        %v497 = vmax.f32 %v433, 0.0
        %v498 = vmax.f32 %v435, 0.0
        %v499 = vmax.f32 %v458, 0.0
        %v500 = vmax.f32 %v460, 0.0
        %v501 = vmax.f32 %v483, 0.0
        %v502 = vmax.f32 %v485, 0.0
        %v503 = vld [vmem:[%s3] sm:$0xf]
        %v504 = vld [vmem:[%s3 + $0x4] sm:$0xf]
        %v505 = vld [vmem:[%s3 + $0x8] sm:$0xf]
        %v506 = vld [vmem:[%s3 + $0xc] sm:$0xf]
        %v507 = vld [vmem:[%s3 + $0x10] sm:$0xf]
        %v508 = vld [vmem:[%s3 + $0x14] sm:$0xf]
        %v509 = vld [vmem:[%s3 + $0x18] sm:$0xf]
        %v510 = vld [vmem:[%s3 + $0x1c] sm:$0xf]
        %v511 = vld [vmem:[%s3 + $0x20] sm:$0xf]
        %v512 = vld [vmem:[%s3 + $0x24] sm:$0xf]
        %v513 = vld [vmem:[%s3 + $0x28] sm:$0xf]
        %v514 = vld [vmem:[%s3 + $0x2c] sm:$0xf]
        %v515 = vld [vmem:[%s3 + $0x30] sm:$0xf]
        %v516 = vld [vmem:[%s3 + $0x34] sm:$0xf]
        %v517 = vld [vmem:[%s3 + $0x38] sm:$0xf]
        %v518 = vld [vmem:[%s3 + $0x3c] sm:$0xf]
        %v519 = vld [vmem:[%s3 + $0x40] sm:$0xf]
        %v520 = vld [vmem:[%s3 + $0x44] sm:$0xf]
        %v521 = vld [vmem:[%s3 + $0x48] sm:$0xf]
        %v522 = vld [vmem:[%s3 + $0x4c] sm:$0xf]
        %v523 = vld [vmem:[%s3 + $0x50] sm:$0xf]
        %v524 = vld [vmem:[%s3 + $0x54] sm:$0xf]
        %v525 = vld [vmem:[%s3 + $0x58] sm:$0xf]
        %v526 = vld [vmem:[%s3 + $0x5c] sm:$0xf]
        %v527 = vld [vmem:[%s3 + $0x60] sm:$0xf]
        %v528 = vld [vmem:[%s3 + $0x64] sm:$0xf]
        %v529 = vld [vmem:[%s3 + $0x68] sm:$0xf]
        %v530 = vld [vmem:[%s3 + $0x6c] sm:$0xf]
        %v531 = vld [vmem:[%s3 + $0x70] sm:$0xf]
        %v532 = vld [vmem:[%s3 + $0x74] sm:$0xf]
        %v533 = vld [vmem:[%s3 + $0x78] sm:$0xf]
        %v534 = vld [vmem:[%s3 + $0x7c] sm:$0xf]
        %v535 = vpack.c.bf16 %v487, %v487
        %v536 = vpack.c.bf16 %v488, %v488
        %v537 = vpack.c.bf16 %v489, %v489
        %v538 = vpack.c.bf16 %v490, %v490
        %v539 = vpack.c.bf16 %v491, %v491
        %v540 = vpack.c.bf16 %v492, %v492
        %v541 = vpack.c.bf16 %v493, %v493
        %v542 = vpack.c.bf16 %v494, %v494
        %v543 = vpack.c.bf16 %v495, %v495
        %v544 = vpack.c.bf16 %v496, %v496
        %v545 = vpack.c.bf16 %v497, %v497
        %v546 = vpack.c.bf16 %v498, %v498
        %v547 = vpack.c.bf16 %v499, %v499
        %v548 = vpack.c.bf16 %v500, %v500
        %v549 = vpack.c.bf16 %v501, %v501
        %v550 = vpack.c.bf16 %v502, %v502
        %v551 = vld [vmem:[%s4] sm:$0xff]
        %v552 = vld [vmem:[%s4 + $0x8] sm:$0xff]
        %v553 = vld [vmem:[%s4 + $0x10] sm:$0xff]
        %v554 = vld [vmem:[%s4 + $0x18] sm:$0xff]
        %556 = vset.pattern.permute.xlu0 0
        %557 = vperm.xlu0 %556, %v551
        %v558 = vpop.permute.xlu0 %557
        %561 = vset.pattern.permute.xlu0 0
        %562 = vperm.xlu0 %561, %v552
        %v563 = vpop.permute.xlu0 %562
        %566 = vset.pattern.permute.xlu0 0
        %567 = vperm.xlu0 %566, %v553
        %v568 = vpop.permute.xlu0 %567
        %571 = vset.pattern.permute.xlu0 0
        %572 = vperm.xlu0 %571, %v554
        %v573 = vpop.permute.xlu0 %572
        %v579 = vunpack.c.l.b16 %v503
        %v580 = vunpack.c.l.b16 %v504
        %v581 = vunpack.c.l.b16 %v505
        %v582 = vunpack.c.l.b16 %v506
        %v583 = vpack.c.b16 %v580, %v579
        %v584 = vpack.c.b16 %v582, %v581
        %v587 = vunpack.c.l.b16 %v535
        %v588 = vunpack.c.l.b16 %v536
        %v589 = vpack.c.b16 %v588, %v587
        %vm591 = vcmask 130048
        %v593 = vsel %vm591, %v583, 0
        %v596 = vsel %vm591, %v584, 0
        %598 = vmatpush.bf16.msra.mxu0 0
        %599 = vmatpush.bf16.msra.mxu0 0
        %600 = vmatpush.bf16.msra.mxu0 0
        %601 = vmatpush.bf16.msra.mxu0 0
        %602 = vmatpush.bf16.msra.mxu0 0
        %603 = vmatpush.bf16.msra.mxu0 0
        %604 = vmatpush.bf16.msra.mxu0 0
        %605 = vmatpush.bf16.msra.mxu0 %v589
        %606 = vmatmul.bf16.gmra.mxu0 %v593
        %v607 = vpop.f32.mrf.mxu0
        %v608 = vadd.f32 %v558, %v607
        %v609 = vpop.f32.mrf.mxu0
        %v610 = vadd.f32 %v563, %v609
        %611 = vmatmul.bf16.gmra.mxu0 %v596
        %v612 = vpop.f32.mrf.mxu0
        %v613 = vadd.f32 %v568, %v612
        %v614 = vpop.f32.mrf.mxu0
        %v615 = vadd.f32 %v573, %v614
        %616 = vdwg.mxu0
        %v621 = vunpack.c.l.b16 %v507
        %v622 = vunpack.c.l.b16 %v508
        %v623 = vunpack.c.l.b16 %v509
        %v624 = vunpack.c.l.b16 %v510
        %v625 = vpack.c.b16 %v622, %v621
        %v626 = vpack.c.b16 %v624, %v623
        %v629 = vunpack.c.l.b16 %v537
        %v630 = vunpack.c.l.b16 %v538
        %v631 = vpack.c.b16 %v630, %v629
        %v634 = vsel %vm591, %v625, 0
        %v637 = vsel %vm591, %v626, 0
        %639 = vmatpush.bf16.msra.mxu0 0
        %640 = vmatpush.bf16.msra.mxu0 0
        %641 = vmatpush.bf16.msra.mxu0 0
        %642 = vmatpush.bf16.msra.mxu0 0
        %643 = vmatpush.bf16.msra.mxu0 0
        %644 = vmatpush.bf16.msra.mxu0 0
        %645 = vmatpush.bf16.msra.mxu0 0
        %646 = vmatpush.bf16.msra.mxu0 %v631
        %647 = vmatmul.bf16.gmra.mxu0 %v634
        %v648 = vpop.f32.mrf.mxu0
        %v649 = vadd.f32 %v558, %v648
        %v650 = vpop.f32.mrf.mxu0
        %v651 = vadd.f32 %v563, %v650
        %652 = vmatmul.bf16.gmra.mxu0 %v637
        %v653 = vpop.f32.mrf.mxu0
        %v654 = vadd.f32 %v568, %v653
        %v655 = vpop.f32.mrf.mxu0
        %v656 = vadd.f32 %v573, %v655
        %657 = vdwg.mxu0
        %v662 = vunpack.c.l.b16 %v511
        %v663 = vunpack.c.l.b16 %v512
        %v664 = vunpack.c.l.b16 %v513
        %v665 = vunpack.c.l.b16 %v514
        %v666 = vpack.c.b16 %v663, %v662
        %v667 = vpack.c.b16 %v665, %v664
        %v670 = vunpack.c.l.b16 %v539
        %v671 = vunpack.c.l.b16 %v540
        %v672 = vpack.c.b16 %v671, %v670
        %v675 = vsel %vm591, %v666, 0
        %v678 = vsel %vm591, %v667, 0
        %680 = vmatpush.bf16.msra.mxu0 0
        %681 = vmatpush.bf16.msra.mxu0 0
        %682 = vmatpush.bf16.msra.mxu0 0
        %683 = vmatpush.bf16.msra.mxu0 0
        %684 = vmatpush.bf16.msra.mxu0 0
        %685 = vmatpush.bf16.msra.mxu0 0
        %686 = vmatpush.bf16.msra.mxu0 0
        %687 = vmatpush.bf16.msra.mxu0 %v672
        %688 = vmatmul.bf16.gmra.mxu0 %v675
        %v689 = vpop.f32.mrf.mxu0
        %v690 = vadd.f32 %v558, %v689
        %v691 = vpop.f32.mrf.mxu0
        %v692 = vadd.f32 %v563, %v691
        %693 = vmatmul.bf16.gmra.mxu0 %v678
        %v694 = vpop.f32.mrf.mxu0
        %v695 = vadd.f32 %v568, %v694
        %v696 = vpop.f32.mrf.mxu0
        %v697 = vadd.f32 %v573, %v696
        %698 = vdwg.mxu0
        %v703 = vunpack.c.l.b16 %v515
        %v704 = vunpack.c.l.b16 %v516
        %v705 = vunpack.c.l.b16 %v517
        %v706 = vunpack.c.l.b16 %v518
        %v707 = vpack.c.b16 %v704, %v703
        %v708 = vpack.c.b16 %v706, %v705
        %v711 = vunpack.c.l.b16 %v541
        %v712 = vunpack.c.l.b16 %v542
        %v713 = vpack.c.b16 %v712, %v711
        %v716 = vsel %vm591, %v707, 0
        %v719 = vsel %vm591, %v708, 0
        %721 = vmatpush.bf16.msra.mxu0 0
        %722 = vmatpush.bf16.msra.mxu0 0
        %723 = vmatpush.bf16.msra.mxu0 0
        %724 = vmatpush.bf16.msra.mxu0 0
        %725 = vmatpush.bf16.msra.mxu0 0
        %726 = vmatpush.bf16.msra.mxu0 0
        %727 = vmatpush.bf16.msra.mxu0 0
        %728 = vmatpush.bf16.msra.mxu0 %v713
        %729 = vmatmul.bf16.gmra.mxu0 %v716
        %v730 = vpop.f32.mrf.mxu0
        %v731 = vadd.f32 %v558, %v730
        %v732 = vpop.f32.mrf.mxu0
        %v733 = vadd.f32 %v563, %v732
        %734 = vmatmul.bf16.gmra.mxu0 %v719
        %v735 = vpop.f32.mrf.mxu0
        %v736 = vadd.f32 %v568, %v735
        %v737 = vpop.f32.mrf.mxu0
        %v738 = vadd.f32 %v573, %v737
        %739 = vdwg.mxu0
        %v744 = vunpack.c.l.b16 %v519
        %v745 = vunpack.c.l.b16 %v520
        %v746 = vunpack.c.l.b16 %v521
        %v747 = vunpack.c.l.b16 %v522
        %v748 = vpack.c.b16 %v745, %v744
        %v749 = vpack.c.b16 %v747, %v746
        %v752 = vunpack.c.l.b16 %v543
        %v753 = vunpack.c.l.b16 %v544
        %v754 = vpack.c.b16 %v753, %v752
        %v757 = vsel %vm591, %v748, 0
        %v760 = vsel %vm591, %v749, 0
        %762 = vmatpush.bf16.msra.mxu0 0
        %763 = vmatpush.bf16.msra.mxu0 0
        %764 = vmatpush.bf16.msra.mxu0 0
        %765 = vmatpush.bf16.msra.mxu0 0
        %766 = vmatpush.bf16.msra.mxu0 0
        %767 = vmatpush.bf16.msra.mxu0 0
        %768 = vmatpush.bf16.msra.mxu0 0
        %769 = vmatpush.bf16.msra.mxu0 %v754
        %770 = vmatmul.bf16.gmra.mxu0 %v757
        %v771 = vpop.f32.mrf.mxu0
        %v772 = vadd.f32 %v558, %v771
        %v773 = vpop.f32.mrf.mxu0
        %v774 = vadd.f32 %v563, %v773
        %775 = vmatmul.bf16.gmra.mxu0 %v760
        %v776 = vpop.f32.mrf.mxu0
        %v777 = vadd.f32 %v568, %v776
        %v778 = vpop.f32.mrf.mxu0
        %v779 = vadd.f32 %v573, %v778
        %780 = vdwg.mxu0
        %v785 = vunpack.c.l.b16 %v523
        %v786 = vunpack.c.l.b16 %v524
        %v787 = vunpack.c.l.b16 %v525
        %v788 = vunpack.c.l.b16 %v526
        %v789 = vpack.c.b16 %v786, %v785
        %v790 = vpack.c.b16 %v788, %v787
        %v793 = vunpack.c.l.b16 %v545
        %v794 = vunpack.c.l.b16 %v546
        %v795 = vpack.c.b16 %v794, %v793
        %v798 = vsel %vm591, %v789, 0
        %v801 = vsel %vm591, %v790, 0
        %803 = vmatpush.bf16.msra.mxu0 0
        %804 = vmatpush.bf16.msra.mxu0 0
        %805 = vmatpush.bf16.msra.mxu0 0
        %806 = vmatpush.bf16.msra.mxu0 0
        %807 = vmatpush.bf16.msra.mxu0 0
        %808 = vmatpush.bf16.msra.mxu0 0
        %809 = vmatpush.bf16.msra.mxu0 0
        %810 = vmatpush.bf16.msra.mxu0 %v795
        %811 = vmatmul.bf16.gmra.mxu0 %v798
        %v812 = vpop.f32.mrf.mxu0
        %v813 = vadd.f32 %v558, %v812
        %v814 = vpop.f32.mrf.mxu0
        %v815 = vadd.f32 %v563, %v814
        %816 = vmatmul.bf16.gmra.mxu0 %v801
        %v817 = vpop.f32.mrf.mxu0
        %v818 = vadd.f32 %v568, %v817
        %v819 = vpop.f32.mrf.mxu0
        %v820 = vadd.f32 %v573, %v819
        %821 = vdwg.mxu0
        %v826 = vunpack.c.l.b16 %v527
        %v827 = vunpack.c.l.b16 %v528
        %v828 = vunpack.c.l.b16 %v529
        %v829 = vunpack.c.l.b16 %v530
        %v830 = vpack.c.b16 %v827, %v826
        %v831 = vpack.c.b16 %v829, %v828
        %v834 = vunpack.c.l.b16 %v547
        %v835 = vunpack.c.l.b16 %v548
        %v836 = vpack.c.b16 %v835, %v834
        %v839 = vsel %vm591, %v830, 0
        %v842 = vsel %vm591, %v831, 0
        %844 = vmatpush.bf16.msra.mxu0 0
        %845 = vmatpush.bf16.msra.mxu0 0
        %846 = vmatpush.bf16.msra.mxu0 0
        %847 = vmatpush.bf16.msra.mxu0 0
        %848 = vmatpush.bf16.msra.mxu0 0
        %849 = vmatpush.bf16.msra.mxu0 0
        %850 = vmatpush.bf16.msra.mxu0 0
        %851 = vmatpush.bf16.msra.mxu0 %v836
        %852 = vmatmul.bf16.gmra.mxu0 %v839
        %v853 = vpop.f32.mrf.mxu0
        %v854 = vadd.f32 %v558, %v853
        %v855 = vpop.f32.mrf.mxu0
        %v856 = vadd.f32 %v563, %v855
        %857 = vmatmul.bf16.gmra.mxu0 %v842
        %v858 = vpop.f32.mrf.mxu0
        %v859 = vadd.f32 %v568, %v858
        %v860 = vpop.f32.mrf.mxu0
        %v861 = vadd.f32 %v573, %v860
        %862 = vdwg.mxu0
        %v867 = vunpack.c.l.b16 %v531
        %v868 = vunpack.c.l.b16 %v532
        %v869 = vunpack.c.l.b16 %v533
        %v870 = vunpack.c.l.b16 %v534
        %v871 = vpack.c.b16 %v868, %v867
        %v872 = vpack.c.b16 %v870, %v869
        %v875 = vunpack.c.l.b16 %v549
        %v876 = vunpack.c.l.b16 %v550
        %v877 = vpack.c.b16 %v876, %v875
        %v880 = vsel %vm591, %v871, 0
        %v883 = vsel %vm591, %v872, 0
        %885 = vmatpush.bf16.msra.mxu0 0
        %886 = vmatpush.bf16.msra.mxu0 0
        %887 = vmatpush.bf16.msra.mxu0 0
        %888 = vmatpush.bf16.msra.mxu0 0
        %889 = vmatpush.bf16.msra.mxu0 0
        %890 = vmatpush.bf16.msra.mxu0 0
        %891 = vmatpush.bf16.msra.mxu0 0
        %892 = vmatpush.bf16.msra.mxu0 %v877
        %893 = vmatmul.bf16.gmra.mxu0 %v880
        %v894 = vpop.f32.mrf.mxu0
        %v895 = vadd.f32 %v558, %v894
        %v896 = vpop.f32.mrf.mxu0
        %v897 = vadd.f32 %v563, %v896
        %898 = vmatmul.bf16.gmra.mxu0 %v883
        %v899 = vpop.f32.mrf.mxu0
        %v900 = vadd.f32 %v568, %v899
        %v901 = vpop.f32.mrf.mxu0
        %v902 = vadd.f32 %v573, %v901
        %903 = vdwg.mxu0
        %v904 = vmax.f32 %v608, 0.0
        %v905 = vmax.f32 %v610, 0.0
        %v906 = vmax.f32 %v613, 0.0
        %v907 = vmax.f32 %v615, 0.0
        %v908 = vmax.f32 %v649, 0.0
        %v909 = vmax.f32 %v651, 0.0
        %v910 = vmax.f32 %v654, 0.0
        %v911 = vmax.f32 %v656, 0.0
        %v912 = vmax.f32 %v690, 0.0
        %v913 = vmax.f32 %v692, 0.0
        %v914 = vmax.f32 %v695, 0.0
        %v915 = vmax.f32 %v697, 0.0
        %v916 = vmax.f32 %v731, 0.0
        %v917 = vmax.f32 %v733, 0.0
        %v918 = vmax.f32 %v736, 0.0
        %v919 = vmax.f32 %v738, 0.0
        %v920 = vmax.f32 %v772, 0.0
        %v921 = vmax.f32 %v774, 0.0
        %v922 = vmax.f32 %v777, 0.0
        %v923 = vmax.f32 %v779, 0.0
        %v924 = vmax.f32 %v813, 0.0
        %v925 = vmax.f32 %v815, 0.0
        %v926 = vmax.f32 %v818, 0.0
        %v927 = vmax.f32 %v820, 0.0
        %v928 = vmax.f32 %v854, 0.0
        %v929 = vmax.f32 %v856, 0.0
        %v930 = vmax.f32 %v859, 0.0
        %v931 = vmax.f32 %v861, 0.0
        %v932 = vmax.f32 %v895, 0.0
        %v933 = vmax.f32 %v897, 0.0
        %v934 = vmax.f32 %v900, 0.0
        %v935 = vmax.f32 %v902, 0.0
        %v936 = vmax.f32 %v904, %v908
        %v937 = vmax.f32 %v936, %v912
        %v938 = vmax.f32 %v937, %v916
        %v939 = vmax.f32 %v938, %v920
        %v940 = vmax.f32 %v939, %v924
        %v941 = vmax.f32 %v940, %v928
        %v942 = vmax.f32 %v941, %v932
        %v943 = vmax.f32 %v905, %v909
        %v944 = vmax.f32 %v943, %v913
        %v945 = vmax.f32 %v944, %v917
        %v946 = vmax.f32 %v945, %v921
        %v947 = vmax.f32 %v946, %v925
        %v948 = vmax.f32 %v947, %v929
        %v949 = vmax.f32 %v948, %v933
        %v950 = vmax.f32 %v906, %v910
        %v951 = vmax.f32 %v950, %v914
        %v952 = vmax.f32 %v951, %v918
        %v953 = vmax.f32 %v952, %v922
        %v954 = vmax.f32 %v953, %v926
        %v955 = vmax.f32 %v954, %v930
        %v956 = vmax.f32 %v955, %v934
        %v957 = vmax.f32 %v907, %v911
        %v958 = vmax.f32 %v957, %v915
        %v959 = vmax.f32 %v958, %v919
        %v960 = vmax.f32 %v959, %v923
        %v961 = vmax.f32 %v960, %v927
        %v962 = vmax.f32 %v961, %v931
        %v963 = vmax.f32 %v962, %v935
        %964 = vst [vmem:[%s239] sm:$0xff] %v942
        %965 = vst [vmem:[%s239 + $0x8] sm:$0xff] %v949
        %966 = vst [vmem:[%s239 + $0x10] sm:$0xff] %v956
        %967 = vst [vmem:[%s239 + $0x18] sm:$0xff] %v963
        %s968 = sand.u32 %s153, 1
        %s969 = scalar_lea.sflag [#allocation3], %s968
        %s970 = sand.u32 %s153, 1
        %s971 = smul.addr %s970, 32
        %s972 = scalar_lea.vmem [#allocation2], %s971
        // Predicated region
        $region41: #{tpu_custom_call.1} parent=39 // pred_check
          %p973 = pneg %p163
        $region42: #{tpu_custom_call.1} parent=39 // pred_check_branch
          %975 = sbr.rel (%p973) target = $region44
        $region43: #{tpu_custom_call.1} parent=39 // pred_region
          %977 = vsyncadd %s969, 0
          %s978 = smul.addr %s23, 4
          %s979 = sadd.s32 %s24, %s978
          %s980 = smul.addr %s979, 8
          %s981 = scalar_lea.hbm %s5, %s980
          %s982 = sshll.u32 %s972, 4
          %s983 = int_to_ptr.vmem [resolvable:$true] %s982
          %s984 = sshll.u32 %s981, 4
          %s985 = int_to_ptr.hbm [resolvable:$true] %s984
          %990 = dma.vmem_to_hbm [thread:$0]  %s983, 512, %s985, %s969, 128, 128, 8
        $region44: #{tpu_custom_call.1} parent=39 // pred_fallthru
          _
      $region40: #{tpu_custom_call.1} parent=5 // pred_fallthru
        _
      %p991 = scmp.le.s32.totalorder 2, %s14
      // Predicated region
      $region45: #{tpu_custom_call.1} parent=5 // pred_check
        %p992 = pneg %p991
      $region46: #{tpu_custom_call.1} parent=5 // pred_check_branch
        %994 = sbr.rel (%p992) target = $region48
      $region47: #{tpu_custom_call.1} parent=5 // pred_region
        %s995 = ssub.s32 %s14, 2
        // Predicated region
        $region49: #{tpu_custom_call.1} parent=47 // pred_check
          %p996 = pneg %p169
        $region50: #{tpu_custom_call.1} parent=47 // pred_check_branch
          %998 = sbr.rel (%p996) target = $region52
        $region51: #{tpu_custom_call.1} parent=47 // pred_region
          %s999 = sand.u32 %s154, 1
          %s1000 = scalar_lea.sflag [#allocation3], %s999
          %s1001 = sand.u32 %s154, 1
          %s1002 = smul.addr %s1001, 32
          %s1003 = scalar_lea.vmem [#allocation2], %s1002
          %1005 = dma.done %s1000, 512
        $region52: #{tpu_custom_call.1} parent=47 // pred_fallthru
          _
      $region48: #{tpu_custom_call.1} parent=5 // pred_fallthru
        _
    $region6: #{tpu_custom_call.1} parent=1 // loop_footer
      %s18 = sadd.s32 1, %s14
    $region7: #{tpu_custom_call.1} parent=1 // loop_footer_branch
      %13 = sbr.rel target = $region3
    $region8: #{tpu_custom_call.1} parent=1 // loop_exit
      _
    %1006 = vsyncpa [#allocation3], 1
    %s1007 = scalar_lea.sflag [#allocation3], 1
    %1008 = vsyncpa %s1007, 1

</llo_original>
